<compile_context>
chip_gen: v7x
topology: tpu7x:2x2x1
jax: 0.10.0
libtpu: 0.0.40
codegen_flags: <defaults>
</compile_context>

<pallas_src>
import jax
import jax.numpy as jnp
from jax.experimental import pallas as pl
from jax.experimental.pallas import tpu as pltpu


def _round_up(x, m):
    return (x + m - 1) // m * m


def _vmem_capacity_bytes():
    """Physical VMEM per TensorCore, with a conservative fallback."""
    try:
        info = pltpu.get_tpu_info()
        cap = int(getattr(info, "vmem_capacity_bytes", 0) or 0)
        if cap > 0:
            return cap
    except Exception:
        pass
    return 64 * 2 ** 20   # v7x per-core size; safe lower bound everywhere


def _vmem_estimate(tm, dp, w_itemsize, w_bufs):
    """Working-set estimate for one grid step (bytes)."""
    io = 2 * 2 * tm * dp * 4                  # x + out, double-buffered, f32
    weights = 2 * w_bufs * dp * dp * w_itemsize
    vecs = 2 * 8 * dp * 4                     # packed parameter table
    temps = 28 * tm * dp                      # ~7 live (tm, dp) f32 body temps
    return io + weights + vecs + temps


def _auto_tm(dp, w_itemsize, capacity):
    """Largest row tile whose working set fits ~80% of VMEM."""
    budget = int(0.8 * capacity)
    for tm in (512, 256, 128, 64, 32, 16, 8):
        if _vmem_estimate(tm, dp, w_itemsize, 1) <= budget:
            return tm
    return 8


def _make_kernel(d_real, d_pad, matmul_dtype):
    """Kernel closure: d_real is the true feature width, d_pad the lane-padded one."""
    inv_d = 1.0 / float(d_real)
    n_pad = float(d_pad - d_real)
    eps = 1e-5

    def layer_norm(v, gamma, beta):
        # Two-pass (PyTorch-style) statistics over the REAL width D.  Padded
        # lanes of v are exactly zero, so each contributes mu^2 to the centered
        # sum; subtract that contribution analytically instead of masking.
        mu = jnp.sum(v, axis=-1, keepdims=True) * inv_d
        vc = v - mu
        ss = jnp.sum(vc * vc, axis=-1, keepdims=True) - n_pad * (mu * mu)
        var = jnp.maximum(ss * inv_d, 0.0)
        # gamma/beta are zero in padded lanes -> padded lanes stay exactly 0.
        return vc * jax.lax.rsqrt(var + eps) * gamma + beta

    def kernel(x_ref, w1t_ref, w2t_ref, vec_ref, o_ref):
        x = x_ref[...]                       # (tm, Dp) f32
        vecs = vec_ref[...]                  # (8, Dp)  f32 packed param table
        b1, b2 = vecs[0:1], vecs[1:2]
        g_in, beta_in = vecs[2:3], vecs[3:4]
        g_out, beta_out = vecs[4:5], vecs[5:6]

        # ---- norm_in -> ReLU -> transform1 (MXU, f32 accumulation) ----
        xb = layer_norm(x, g_in, beta_in)
        h_in = jnp.maximum(xb, 0.0).astype(matmul_dtype)
        h = jnp.dot(h_in, w1t_ref[...],
                    preferred_element_type=jnp.float32) + b1

        # ---- norm_out -> ReLU -> transform2 -> residual add ----
        hb = layer_norm(h, g_out, beta_out)
        h2 = jnp.maximum(hb, 0.0).astype(matmul_dtype)
        y = jnp.dot(h2, w2t_ref[...],
                    preferred_element_type=jnp.float32) + b2
        o_ref[...] = (x + y).astype(o_ref.dtype)

    return kernel


def prepare_params(params, matmul_dtype=jnp.bfloat16):
    """One-time parameter prep: pre-transpose weights, pad D to a multiple of
    128, cast matmul weights, and pack the six (D,) vectors into one (8, Dp)
    table (single DMA per grid step)."""
    D = params["w1"].shape[0]
    Dp = _round_up(D, 128)

    def pad_mat(w):
        return jnp.pad(w, ((0, Dp - D), (0, Dp - D)))

    w1t = pad_mat(params["w1"].T).astype(matmul_dtype)
    w2t = pad_mat(params["w2"].T).astype(matmul_dtype)

    vecs = jnp.zeros((8, Dp), jnp.float32)
    for row, name in enumerate(
            ["b1", "b2", "gamma_in", "beta_in", "gamma_out", "beta_out"]):
        vecs = vecs.at[row, :D].set(params[name].astype(jnp.float32))

    return {"w1t": w1t, "w2t": w2t, "vecs": vecs, "nn_dim": D}


def fc_res_block(x, prep, *, tm=None, out_dtype=jnp.float32,
                 single_buffer_weights=True):
    """x: (N, D) float32.  prep: output of prepare_params().

    Note: for genuinely tiny D (<~64) the pad-to-128 lanes inflate MXU work and
    a fused XLA path will win on every generation; dispatch at the call site if
    that regime matters.  out_dtype=jnp.bfloat16 halves the output write stream
    in the HBM-bound (small-D) regime if the consumer accepts it.
    """
    N, D = x.shape
    assert D == prep["nn_dim"]
    Dp = prep["vecs"].shape[1]
    matmul_dtype = prep["w1t"].dtype
    w_itemsize = jnp.dtype(matmul_dtype).itemsize

    capacity = _vmem_capacity_bytes()

    # Row tile: largest tile whose working set fits ~80% of VMEM, then clamped
    # so the batch yields >= 2 grid steps (keeps v7x's second TensorCore busy
    # via the "parallel" axis) and never exceeds the padded batch.
    tm_target = (_auto_tm(Dp, w_itemsize, capacity) if tm is None
                 else max(8, _round_up(int(tm), 8)))
    tm_eff = max(8, min(tm_target, _round_up(-(-N // 2), 8)))
    Np = _round_up(N, tm_eff)

    x_p = x
    if (Np, Dp) != (N, D):
        x_p = jnp.pad(x, ((0, Np - N), (0, Dp - D)))

    kernel = _make_kernel(D, Dp, matmul_dtype)

    def _call(single_buf):
        row_spec = pl.BlockSpec((tm_eff, Dp), lambda i: (i, 0))
        if single_buf:
            # Grid-invariant operands: one VMEM buffer each.  Pallas skips the
            # re-fetch for a constant index_map, so double-buffering is waste.
            w_spec = pl.BlockSpec((Dp, Dp), lambda i: (0, 0),
                                  pipeline_mode=pl.Buffered(1))
            vec_spec = pl.BlockSpec((8, Dp), lambda i: (0, 0),
                                    pipeline_mode=pl.Buffered(1))
        else:
            w_spec = pl.BlockSpec((Dp, Dp), lambda i: (0, 0))
            vec_spec = pl.BlockSpec((8, Dp), lambda i: (0, 0))

        est = _vmem_estimate(tm_eff, Dp, w_itemsize, 1 if single_buf else 2)
        vmem_limit = int(min(max(int(1.5 * est), 32 * 2 ** 20),
                             int(0.9 * capacity)))

        return pl.pallas_call(
            kernel,
            out_shape=jax.ShapeDtypeStruct((Np, Dp), out_dtype),
            grid_spec=pltpu.PrefetchScalarGridSpec(
                num_scalar_prefetch=0,
                grid=(Np // tm_eff,),
                in_specs=[row_spec,   # x
                          w_spec,     # w1^T (padded, matmul dtype)
                          w_spec,     # w2^T
                          vec_spec],  # packed b1/b2/gammas/betas
                out_specs=row_spec,
            ),
            compiler_params=pltpu.CompilerParams(
                dimension_semantics=("parallel",),
                vmem_limit_bytes=vmem_limit,
            ),
        )(x_p, prep["w1t"], prep["w2t"], prep["vecs"])

    if single_buffer_weights:
        try:
            out_p = _call(True)
        except Exception:
            # Fallback for JAX builds without pl.Buffered / pipeline_mode.
            out_p = _call(False)
    else:
        out_p = _call(False)

    if (Np, Dp) != (N, D):
        out_p = out_p[:N, :D]
    return out_p


def init_params(key, nn_dim):
    k1, k2, k3, k4 = jax.random.split(key, 4)
    bound = 1.0 / jnp.sqrt(nn_dim)
    return {
        # torch.nn.init.normal_(weight, std=0.005)
        "w1": 0.005 * jax.random.normal(k1, (nn_dim, nn_dim), jnp.float32),
        "w2": 0.005 * jax.random.normal(k2, (nn_dim, nn_dim), jnp.float32),
        # PyTorch Linear default bias init: U(-1/sqrt(fan_in), 1/sqrt(fan_in))
        "b1": jax.random.uniform(k3, (nn_dim,), jnp.float32, -bound, bound),
        "b2": jax.random.uniform(k4, (nn_dim,), jnp.float32, -bound, bound),
        # LayerNorm defaults: weight=1, bias=0
        "gamma_in": jnp.ones((nn_dim,), jnp.float32),
        "beta_in": jnp.zeros((nn_dim,), jnp.float32),
        "gamma_out": jnp.ones((nn_dim,), jnp.float32),
        "beta_out": jnp.zeros((nn_dim,), jnp.float32),
    }


def _reference(x, p):
    eps = 1e-5
    hp = jax.lax.Precision.HIGHEST

    def ln(v, g, b):
        mu = jnp.mean(v, -1, keepdims=True)
        var = jnp.mean((v - mu) ** 2, -1, keepdims=True)
        return (v - mu) / jnp.sqrt(var + eps) * g + b

    xb = ln(x, p["gamma_in"], p["beta_in"])
    xb = jnp.dot(jnp.maximum(xb, 0.0), p["w1"].T, precision=hp) + p["b1"]
    xb = ln(xb, p["gamma_out"], p["beta_out"])
    return x + jnp.dot(jnp.maximum(xb, 0.0), p["w2"].T, precision=hp) + p["b2"]


if __name__ == "__main__":
    key = jax.random.PRNGKey(0)
    kx, kp, kx2, kp2 = jax.random.split(key, 4)

    # 1) small module-consistent shape, bf16 matmul path (production default).
    batch, nn_dim = 8, 32
    x = jax.random.normal(kx, (batch, nn_dim), jnp.float32)
    params = init_params(kp, nn_dim)
    ref = _reference(x, params)

    prep_bf16 = prepare_params(params, jnp.bfloat16)
    out = jax.block_until_ready(fc_res_block(x, prep_bf16))
    assert out.shape == (batch, nn_dim)
    assert jnp.allclose(out, ref, atol=1e-2, rtol=1e-2), "bf16 path mismatch"

    # 2) same shape, f32 matmul path with a tight tolerance — validates the
    #    two-pass LN stats and padded-lane correction independent of bf16.
    prep_f32 = prepare_params(params, jnp.float32)
    out32 = jax.block_until_ready(fc_res_block(x, prep_f32))
    assert jnp.allclose(out32, ref, atol=1e-4, rtol=1e-4), "f32 path mismatch"

    # 3) ragged, larger shape: exercises batch padding, the >=2-grid-step clamp
    #    (200 rows -> tm_eff=104, grid=(2,)) and feature-lane padding 160->256.
    n2, d2 = 200, 160
    x2 = jax.random.normal(kx2, (n2, d2), jnp.float32)
    params2 = init_params(kp2, d2)
    prep2 = prepare_params(params2, jnp.bfloat16)
    out2 = jax.block_until_ready(fc_res_block(x2, prep2))
    ref2 = _reference(x2, params2)
    assert out2.shape == (n2, d2)
    assert jnp.allclose(out2, ref2, atol=1e-2, rtol=1e-2), "large-shape mismatch"

    print("KERNEL_OK")
</pallas_src>

<mosaic_0001>
module attributes {stable_mosaic.version = 11 : i64} {
  func.func @kernel(%arg0: i32, %arg1: memref<8x128xf32, #tpu.memory_space<vmem>>, %arg2: memref<128x128xbf16, #tpu.memory_space<vmem>>, %arg3: memref<128x128xbf16, #tpu.memory_space<vmem>>, %arg4: memref<8x128xf32, #tpu.memory_space<vmem>>, %arg5: memref<8x128xf32, #tpu.memory_space<vmem>>) attributes {dimension_semantics = [#tpu.dimension_semantics<parallel>], iteration_bounds = array<i64: 1>, scalar_prefetch = 0 : i64, scratch_operands = 0 : i64, tpu.core_type = #tpu.core_type<tc>, window_params = [{transform_indices = @transform_0, window_bounds = array<i64: 8, 128>}, {pipeline_mode = #tpu.pipeline_mode<synchronous>, transform_indices = @transform_1, window_bounds = array<i64: 128, 128>}, {pipeline_mode = #tpu.pipeline_mode<synchronous>, transform_indices = @transform_2, window_bounds = array<i64: 128, 128>}, {pipeline_mode = #tpu.pipeline_mode<synchronous>, transform_indices = @transform_3, window_bounds = array<i64: 8, 128>}, {transform_indices = @transform_4, window_bounds = array<i64: 8, 128>}]} {
    %c0 = arith.constant 0 : index
    %c0_0 = arith.constant 0 : index
    %0 = vector.load %arg1[%c0, %c0_0] : memref<8x128xf32, #tpu.memory_space<vmem>>, vector<8x128xf32>
    %c0_1 = arith.constant 0 : index
    %c0_2 = arith.constant 0 : index
    %1 = vector.load %arg4[%c0_1, %c0_2] : memref<8x128xf32, #tpu.memory_space<vmem>>, vector<8x128xf32>
    %2 = vector.extract_strided_slice %1 {offsets = [0, 0], sizes = [1, 128], strides = [1, 1]} : vector<8x128xf32> to vector<1x128xf32>
    %3 = vector.extract_strided_slice %1 {offsets = [1, 0], sizes = [1, 128], strides = [1, 1]} : vector<8x128xf32> to vector<1x128xf32>
    %4 = vector.extract_strided_slice %1 {offsets = [2, 0], sizes = [1, 128], strides = [1, 1]} : vector<8x128xf32> to vector<1x128xf32>
    %5 = vector.extract_strided_slice %1 {offsets = [3, 0], sizes = [1, 128], strides = [1, 1]} : vector<8x128xf32> to vector<1x128xf32>
    %6 = vector.extract_strided_slice %1 {offsets = [4, 0], sizes = [1, 128], strides = [1, 1]} : vector<8x128xf32> to vector<1x128xf32>
    %7 = vector.extract_strided_slice %1 {offsets = [5, 0], sizes = [1, 128], strides = [1, 1]} : vector<8x128xf32> to vector<1x128xf32>
    %cst = arith.constant dense<0.000000e+00> : vector<8xf32>
    %8 = vector.multi_reduction <add>, %0, %cst [1] : vector<8x128xf32> to vector<8xf32>
    %9 = vector.shape_cast %8 : vector<8xf32> to vector<8x1xf32>
    %cst_3 = arith.constant 3.125000e-02 : f32
    %10 = vector.broadcast %cst_3 : f32 to vector<8x1xf32>
    %11 = arith.mulf %9, %10 : vector<8x1xf32>
    %12 = vector.broadcast %11 : vector<8x1xf32> to vector<8x128xf32>
    %13 = arith.subf %0, %12 : vector<8x128xf32>
    %14 = arith.mulf %13, %13 : vector<8x128xf32>
    %cst_4 = arith.constant dense<0.000000e+00> : vector<8xf32>
    %15 = vector.multi_reduction <add>, %14, %cst_4 [1] : vector<8x128xf32> to vector<8xf32>
    %16 = vector.shape_cast %15 : vector<8xf32> to vector<8x1xf32>
    %17 = arith.mulf %11, %11 : vector<8x1xf32>
    %cst_5 = arith.constant 9.600000e+01 : f32
    %18 = vector.broadcast %cst_5 : f32 to vector<8x1xf32>
    %19 = arith.mulf %18, %17 : vector<8x1xf32>
    %20 = arith.subf %16, %19 : vector<8x1xf32>
    %cst_6 = arith.constant 3.125000e-02 : f32
    %21 = vector.broadcast %cst_6 : f32 to vector<8x1xf32>
    %22 = arith.mulf %20, %21 : vector<8x1xf32>
    %cst_7 = arith.constant 0.000000e+00 : f32
    %23 = vector.broadcast %cst_7 : f32 to vector<8x1xf32>
    %24 = arith.maximumf %22, %23 : vector<8x1xf32>
    %cst_8 = arith.constant 9.99999974E-6 : f32
    %25 = vector.broadcast %cst_8 : f32 to vector<8x1xf32>
    %26 = arith.addf %24, %25 : vector<8x1xf32>
    %27 = math.rsqrt %26 : vector<8x1xf32>
    %28 = vector.broadcast %27 : vector<8x1xf32> to vector<8x128xf32>
    %29 = arith.mulf %13, %28 : vector<8x128xf32>
    %30 = vector.broadcast %4 : vector<1x128xf32> to vector<8x128xf32>
    %31 = arith.mulf %29, %30 : vector<8x128xf32>
    %32 = vector.broadcast %5 : vector<1x128xf32> to vector<8x128xf32>
    %33 = arith.addf %31, %32 : vector<8x128xf32>
    %cst_9 = arith.constant 0.000000e+00 : f32
    %34 = vector.broadcast %cst_9 : f32 to vector<8x128xf32>
    %35 = arith.maximumf %33, %34 : vector<8x128xf32>
    %36 = arith.truncf %35 : vector<8x128xf32> to vector<8x128xbf16>
    %c0_10 = arith.constant 0 : index
    %c0_11 = arith.constant 0 : index
    %37 = vector.load %arg2[%c0_10, %c0_11] : memref<128x128xbf16, #tpu.memory_space<vmem>>, vector<128x128xbf16>
    %cst_12 = arith.constant dense<0.000000e+00> : vector<8x128xf32>
    %38 = tpu.matmul %36, %37, %cst_12 {dimension_numbers = #tpu.dot_dimension_numbers<[1], [0], [0], [1], [0, 0, 1, 1], [], []>} : vector<8x128xbf16>, vector<128x128xbf16>, vector<8x128xf32> -> vector<8x128xf32>
    %39 = vector.broadcast %2 : vector<1x128xf32> to vector<8x128xf32>
    %40 = arith.addf %38, %39 : vector<8x128xf32>
    %cst_13 = arith.constant dense<0.000000e+00> : vector<8xf32>
    %41 = vector.multi_reduction <add>, %40, %cst_13 [1] : vector<8x128xf32> to vector<8xf32>
    %42 = vector.shape_cast %41 : vector<8xf32> to vector<8x1xf32>
    %cst_14 = arith.constant 3.125000e-02 : f32
    %43 = vector.broadcast %cst_14 : f32 to vector<8x1xf32>
    %44 = arith.mulf %42, %43 : vector<8x1xf32>
    %45 = vector.broadcast %44 : vector<8x1xf32> to vector<8x128xf32>
    %46 = arith.subf %40, %45 : vector<8x128xf32>
    %47 = arith.mulf %46, %46 : vector<8x128xf32>
    %cst_15 = arith.constant dense<0.000000e+00> : vector<8xf32>
    %48 = vector.multi_reduction <add>, %47, %cst_15 [1] : vector<8x128xf32> to vector<8xf32>
    %49 = vector.shape_cast %48 : vector<8xf32> to vector<8x1xf32>
    %50 = arith.mulf %44, %44 : vector<8x1xf32>
    %cst_16 = arith.constant 9.600000e+01 : f32
    %51 = vector.broadcast %cst_16 : f32 to vector<8x1xf32>
    %52 = arith.mulf %51, %50 : vector<8x1xf32>
    %53 = arith.subf %49, %52 : vector<8x1xf32>
    %cst_17 = arith.constant 3.125000e-02 : f32
    %54 = vector.broadcast %cst_17 : f32 to vector<8x1xf32>
    %55 = arith.mulf %53, %54 : vector<8x1xf32>
    %cst_18 = arith.constant 0.000000e+00 : f32
    %56 = vector.broadcast %cst_18 : f32 to vector<8x1xf32>
    %57 = arith.maximumf %55, %56 : vector<8x1xf32>
    %cst_19 = arith.constant 9.99999974E-6 : f32
    %58 = vector.broadcast %cst_19 : f32 to vector<8x1xf32>
    %59 = arith.addf %57, %58 : vector<8x1xf32>
    %60 = math.rsqrt %59 : vector<8x1xf32>
    %61 = vector.broadcast %60 : vector<8x1xf32> to vector<8x128xf32>
    %62 = arith.mulf %46, %61 : vector<8x128xf32>
    %63 = vector.broadcast %6 : vector<1x128xf32> to vector<8x128xf32>
    %64 = arith.mulf %62, %63 : vector<8x128xf32>
    %65 = vector.broadcast %7 : vector<1x128xf32> to vector<8x128xf32>
    %66 = arith.addf %64, %65 : vector<8x128xf32>
    %cst_20 = arith.constant 0.000000e+00 : f32
    %67 = vector.broadcast %cst_20 : f32 to vector<8x128xf32>
    %68 = arith.maximumf %66, %67 : vector<8x128xf32>
    %69 = arith.truncf %68 : vector<8x128xf32> to vector<8x128xbf16>
    %c0_21 = arith.constant 0 : index
    %c0_22 = arith.constant 0 : index
    %70 = vector.load %arg3[%c0_21, %c0_22] : memref<128x128xbf16, #tpu.memory_space<vmem>>, vector<128x128xbf16>
    %cst_23 = arith.constant dense<0.000000e+00> : vector<8x128xf32>
    %71 = tpu.matmul %69, %70, %cst_23 {dimension_numbers = #tpu.dot_dimension_numbers<[1], [0], [0], [1], [0, 0, 1, 1], [], []>} : vector<8x128xbf16>, vector<128x128xbf16>, vector<8x128xf32> -> vector<8x128xf32>
    %72 = vector.broadcast %3 : vector<1x128xf32> to vector<8x128xf32>
    %73 = arith.addf %71, %72 : vector<8x128xf32>
    %74 = arith.addf %0, %73 : vector<8x128xf32>
    %c0_24 = arith.constant 0 : index
    %c0_25 = arith.constant 0 : index
    %75 = vector.load %arg5[%c0_24, %c0_25] : memref<8x128xf32, #tpu.memory_space<vmem>>, vector<8x128xf32>
    tpu.vector_store %arg5[%c0_24, %c0_25], %74 {strides = array<i32>} : memref<8x128xf32, #tpu.memory_space<vmem>>, vector<8x128xf32>,
    return
  }
  func.func @transform_0(%arg0: i32) -> (i32, i32) {
    %c0_i32 = arith.constant 0 : i32
    %c0_i32_0 = arith.constant 0 : i32
    return %arg0, %c0_i32 : i32, i32
  }
  func.func @transform_1(%arg0: i32) -> (i32, i32) {
    %c0_i32 = arith.constant 0 : i32
    %c0_i32_0 = arith.constant 0 : i32
    %c0_i32_1 = arith.constant 0 : i32
    return %c0_i32, %c0_i32_0 : i32, i32
  }
  func.func @transform_2(%arg0: i32) -> (i32, i32) {
    %c0_i32 = arith.constant 0 : i32
    %c0_i32_0 = arith.constant 0 : i32
    %c0_i32_1 = arith.constant 0 : i32
    return %c0_i32, %c0_i32_0 : i32, i32
  }
  func.func @transform_3(%arg0: i32) -> (i32, i32) {
    %c0_i32 = arith.constant 0 : i32
    %c0_i32_0 = arith.constant 0 : i32
    %c0_i32_1 = arith.constant 0 : i32
    return %c0_i32, %c0_i32_0 : i32, i32
  }
  func.func @transform_4(%arg0: i32) -> (i32, i32) {
    %c0_i32 = arith.constant 0 : i32
    %c0_i32_0 = arith.constant 0 : i32
    return %arg0, %c0_i32 : i32, i32
  }
}

module attributes {stable_mosaic.version = 11 : i64} {
  func.func @kernel(%arg0: i32, %arg1: memref<8x128xf32, #tpu.memory_space<vmem>>, %arg2: memref<128x128xbf16, #tpu.memory_space<vmem>>, %arg3: memref<128x128xbf16, #tpu.memory_space<vmem>>, %arg4: memref<8x128xf32, #tpu.memory_space<vmem>>, %arg5: memref<8x128xf32, #tpu.memory_space<vmem>>) attributes {dimension_semantics = [#tpu.dimension_semantics<parallel>], iteration_bounds = array<i64: 1>, scalar_prefetch = 0 : i64, scratch_operands = 0 : i64, tpu.core_type = #tpu.core_type<tc>, window_params = [{transform_indices = @transform_0, window_bounds = array<i64: 8, 128>}, {pipeline_mode = #tpu.pipeline_mode<synchronous>, transform_indices = @transform_1, window_bounds = array<i64: 128, 128>}, {pipeline_mode = #tpu.pipeline_mode<synchronous>, transform_indices = @transform_2, window_bounds = array<i64: 128, 128>}, {pipeline_mode = #tpu.pipeline_mode<synchronous>, transform_indices = @transform_3, window_bounds = array<i64: 8, 128>}, {transform_indices = @transform_4, window_bounds = array<i64: 8, 128>}]} {
    %c0 = arith.constant 0 : index
    %c0_0 = arith.constant 0 : index
    %0 = vector.load %arg1[%c0, %c0_0] : memref<8x128xf32, #tpu.memory_space<vmem>>, vector<8x128xf32>
    %c0_1 = arith.constant 0 : index
    %c0_2 = arith.constant 0 : index
    %1 = vector.load %arg4[%c0_1, %c0_2] : memref<8x128xf32, #tpu.memory_space<vmem>>, vector<8x128xf32>
    %2 = vector.extract_strided_slice %1 {offsets = [0, 0], sizes = [1, 128], strides = [1, 1]} : vector<8x128xf32> to vector<1x128xf32>
    %3 = vector.extract_strided_slice %1 {offsets = [1, 0], sizes = [1, 128], strides = [1, 1]} : vector<8x128xf32> to vector<1x128xf32>
    %4 = vector.extract_strided_slice %1 {offsets = [2, 0], sizes = [1, 128], strides = [1, 1]} : vector<8x128xf32> to vector<1x128xf32>
    %5 = vector.extract_strided_slice %1 {offsets = [3, 0], sizes = [1, 128], strides = [1, 1]} : vector<8x128xf32> to vector<1x128xf32>
    %6 = vector.extract_strided_slice %1 {offsets = [4, 0], sizes = [1, 128], strides = [1, 1]} : vector<8x128xf32> to vector<1x128xf32>
    %7 = vector.extract_strided_slice %1 {offsets = [5, 0], sizes = [1, 128], strides = [1, 1]} : vector<8x128xf32> to vector<1x128xf32>
    %cst = arith.constant dense<0.000000e+00> : vector<8xf32>
    %8 = vector.multi_reduction <add>, %0, %cst [1] : vector<8x128xf32> to vector<8xf32>
    %9 = vector.shape_cast %8 : vector<8xf32> to vector<8x1xf32>
    %cst_3 = arith.constant 3.125000e-02 : f32
    %10 = vector.broadcast %cst_3 : f32 to vector<8x1xf32>
    %11 = arith.mulf %9, %10 : vector<8x1xf32>
    %12 = vector.broadcast %11 : vector<8x1xf32> to vector<8x128xf32>
    %13 = arith.subf %0, %12 : vector<8x128xf32>
    %14 = arith.mulf %13, %13 : vector<8x128xf32>
    %cst_4 = arith.constant dense<0.000000e+00> : vector<8xf32>
    %15 = vector.multi_reduction <add>, %14, %cst_4 [1] : vector<8x128xf32> to vector<8xf32>
    %16 = vector.shape_cast %15 : vector<8xf32> to vector<8x1xf32>
    %17 = arith.mulf %11, %11 : vector<8x1xf32>
    %cst_5 = arith.constant 9.600000e+01 : f32
    %18 = vector.broadcast %cst_5 : f32 to vector<8x1xf32>
    %19 = arith.mulf %18, %17 : vector<8x1xf32>
    %20 = arith.subf %16, %19 : vector<8x1xf32>
    %cst_6 = arith.constant 3.125000e-02 : f32
    %21 = vector.broadcast %cst_6 : f32 to vector<8x1xf32>
    %22 = arith.mulf %20, %21 : vector<8x1xf32>
    %cst_7 = arith.constant 0.000000e+00 : f32
    %23 = vector.broadcast %cst_7 : f32 to vector<8x1xf32>
    %24 = arith.maximumf %22, %23 : vector<8x1xf32>
    %cst_8 = arith.constant 9.99999974E-6 : f32
    %25 = vector.broadcast %cst_8 : f32 to vector<8x1xf32>
    %26 = arith.addf %24, %25 : vector<8x1xf32>
    %27 = math.rsqrt %26 : vector<8x1xf32>
    %28 = vector.broadcast %27 : vector<8x1xf32> to vector<8x128xf32>
    %29 = arith.mulf %13, %28 : vector<8x128xf32>
    %30 = vector.broadcast %4 : vector<1x128xf32> to vector<8x128xf32>
    %31 = arith.mulf %29, %30 : vector<8x128xf32>
    %32 = vector.broadcast %5 : vector<1x128xf32> to vector<8x128xf32>
    %33 = arith.addf %31, %32 : vector<8x128xf32>
    %cst_9 = arith.constant 0.000000e+00 : f32
    %34 = vector.broadcast %cst_9 : f32 to vector<8x128xf32>
    %35 = arith.maximumf %33, %34 : vector<8x128xf32>
    %36 = arith.truncf %35 : vector<8x128xf32> to vector<8x128xbf16>
    %c0_10 = arith.constant 0 : index
    %c0_11 = arith.constant 0 : index
    %37 = vector.load %arg2[%c0_10, %c0_11] : memref<128x128xbf16, #tpu.memory_space<vmem>>, vector<128x128xbf16>
    %cst_12 = arith.constant dense<0.000000e+00> : vector<8x128xf32>
    %38 = tpu.matmul %36, %37, %cst_12 {dimension_numbers = #tpu.dot_dimension_numbers<[1], [0], [0], [1], [0, 0, 1, 1], [], []>} : vector<8x128xbf16>, vector<128x128xbf16>, vector<8x128xf32> -> vector<8x128xf32>
    %39 = vector.broadcast %2 : vector<1x128xf32> to vector<8x128xf32>
    %40 = arith.addf %38, %39 : vector<8x128xf32>
    %cst_13 = arith.constant dense<0.000000e+00> : vector<8xf32>
    %41 = vector.multi_reduction <add>, %40, %cst_13 [1] : vector<8x128xf32> to vector<8xf32>
    %42 = vector.shape_cast %41 : vector<8xf32> to vector<8x1xf32>
    %cst_14 = arith.constant 3.125000e-02 : f32
    %43 = vector.broadcast %cst_14 : f32 to vector<8x1xf32>
    %44 = arith.mulf %42, %43 : vector<8x1xf32>
    %45 = vector.broadcast %44 : vector<8x1xf32> to vector<8x128xf32>
    %46 = arith.subf %40, %45 : vector<8x128xf32>
    %47 = arith.mulf %46, %46 : vector<8x128xf32>
    %cst_15 = arith.constant dense<0.000000e+00> : vector<8xf32>
    %48 = vector.multi_reduction <add>, %47, %cst_15 [1] : vector<8x128xf32> to vector<8xf32>
    %49 = vector.shape_cast %48 : vector<8xf32> to vector<8x1xf32>
    %50 = arith.mulf %44, %44 : vector<8x1xf32>
    %cst_16 = arith.constant 9.600000e+01 : f32
    %51 = vector.broadcast %cst_16 : f32 to vector<8x1xf32>
    %52 = arith.mulf %51, %50 : vector<8x1xf32>
    %53 = arith.subf %49, %52 : vector<8x1xf32>
    %cst_17 = arith.constant 3.125000e-02 : f32
    %54 = vector.broadcast %cst_17 : f32 to vector<8x1xf32>
    %55 = arith.mulf %53, %54 : vector<8x1xf32>
    %cst_18 = arith.constant 0.000000e+00 : f32
    %56 = vector.broadcast %cst_18 : f32 to vector<8x1xf32>
    %57 = arith.maximumf %55, %56 : vector<8x1xf32>
    %cst_19 = arith.constant 9.99999974E-6 : f32
    %58 = vector.broadcast %cst_19 : f32 to vector<8x1xf32>
    %59 = arith.addf %57, %58 : vector<8x1xf32>
    %60 = math.rsqrt %59 : vector<8x1xf32>
    %61 = vector.broadcast %60 : vector<8x1xf32> to vector<8x128xf32>
    %62 = arith.mulf %46, %61 : vector<8x128xf32>
    %63 = vector.broadcast %6 : vector<1x128xf32> to vector<8x128xf32>
    %64 = arith.mulf %62, %63 : vector<8x128xf32>
    %65 = vector.broadcast %7 : vector<1x128xf32> to vector<8x128xf32>
    %66 = arith.addf %64, %65 : vector<8x128xf32>
    %cst_20 = arith.constant 0.000000e+00 : f32
    %67 = vector.broadcast %cst_20 : f32 to vector<8x128xf32>
    %68 = arith.maximumf %66, %67 : vector<8x128xf32>
    %69 = arith.truncf %68 : vector<8x128xf32> to vector<8x128xbf16>
    %c0_21 = arith.constant 0 : index
    %c0_22 = arith.constant 0 : index
    %70 = vector.load %arg3[%c0_21, %c0_22] : memref<128x128xbf16, #tpu.memory_space<vmem>>, vector<128x128xbf16>
    %cst_23 = arith.constant dense<0.000000e+00> : vector<8x128xf32>
    %71 = tpu.matmul %69, %70, %cst_23 {dimension_numbers = #tpu.dot_dimension_numbers<[1], [0], [0], [1], [0, 0, 1, 1], [], []>} : vector<8x128xbf16>, vector<128x128xbf16>, vector<8x128xf32> -> vector<8x128xf32>
    %72 = vector.broadcast %3 : vector<1x128xf32> to vector<8x128xf32>
    %73 = arith.addf %71, %72 : vector<8x128xf32>
    %74 = arith.addf %0, %73 : vector<8x128xf32>
    %c0_24 = arith.constant 0 : index
    %c0_25 = arith.constant 0 : index
    %75 = vector.load %arg5[%c0_24, %c0_25] : memref<8x128xf32, #tpu.memory_space<vmem>>, vector<8x128xf32>
    tpu.vector_store %arg5[%c0_24, %c0_25], %74 {strides = array<i32>} : memref<8x128xf32, #tpu.memory_space<vmem>>, vector<8x128xf32>,
    return
  }
  func.func @transform_0(%arg0: i32) -> (i32, i32) {
    %c0_i32 = arith.constant 0 : i32
    %c0_i32_0 = arith.constant 0 : i32
    return %arg0, %c0_i32 : i32, i32
  }
  func.func @transform_1(%arg0: i32) -> (i32, i32) {
    %c0_i32 = arith.constant 0 : i32
    %c0_i32_0 = arith.constant 0 : i32
    %c0_i32_1 = arith.constant 0 : i32
    return %c0_i32, %c0_i32_0 : i32, i32
  }
  func.func @transform_2(%arg0: i32) -> (i32, i32) {
    %c0_i32 = arith.constant 0 : i32
    %c0_i32_0 = arith.constant 0 : i32
    %c0_i32_1 = arith.constant 0 : i32
    return %c0_i32, %c0_i32_0 : i32, i32
  }
  func.func @transform_3(%arg0: i32) -> (i32, i32) {
    %c0_i32 = arith.constant 0 : i32
    %c0_i32_0 = arith.constant 0 : i32
    %c0_i32_1 = arith.constant 0 : i32
    return %c0_i32, %c0_i32_0 : i32, i32
  }
  func.func @transform_4(%arg0: i32) -> (i32, i32) {
    %c0_i32 = arith.constant 0 : i32
    %c0_i32_0 = arith.constant 0 : i32
    return %arg0, %c0_i32 : i32, i32
  }
}

</mosaic_0001>

<llo_original>
// kernel: tpu_custom_call.1
$region0: #{tpu_custom_call.1}
  #allocation0 [shape = 'u32[]', space=smem, size = 0x4, offset = 0x4, fixed_abs, tag = 'smem constant byte address 0x4 - core index']
  #allocation1 [shape = 'u32[144,128]{1,0:T(1,128)}', space=vmem, size = 0x12000, scoped, tag = 'internal scratch']
  %s0 = inlined_call_operand.hbm [shape: f32[8,128], index: 0, kind: input, shape index: {}]
  %s1 = inlined_call_operand.hbm [shape: bf16[128,128], index: 1, kind: input, shape index: {}]
  %s2 = inlined_call_operand.hbm [shape: bf16[128,128], index: 2, kind: input, shape index: {}]
  %s3 = inlined_call_operand.vmem [shape: f32[8,128], index: 3, kind: input, shape index: {}]
  %s4 = inlined_call_operand.hbm [shape: f32[8,128], index: 4, kind: output, shape index: {}]
  %s5 = sld [smem:[#allocation0]]
  $region38: #{tpu_custom_call.1} parent=0
    _
  %s7 = ssub.s32 1, %s5
  %s8 = scalar_select 0, %s7, %s5
  $region1: #{tpu_custom_call.1} parent=0
    #allocation2 [shape = 'u8[4096]{0}', space=vmem, size = 0x1000, scoped, tag = 'input window, operand 0, single buffered']
    #allocation3 [shape = 's32[1]{0}', space=sflag, size = 0x4, scoped, tag = 'scoped memory for tpu_custom_call.1']
    #allocation4 [shape = 's32[1]{0}', space=sflag, size = 0x4, scoped, tag = 'scoped memory for tpu_custom_call.1']
    #allocation5 [shape = 'u8[32768]{0}', space=vmem, size = 0x8000, scoped, tag = 'input window, operand 1, single buffered']
    #allocation6 [shape = 's32[1]{0}', space=sflag, size = 0x4, scoped, tag = 'scoped memory for tpu_custom_call.1']
    #allocation7 [shape = 'u8[32768]{0}', space=vmem, size = 0x8000, scoped, tag = 'input window, operand 2, single buffered']
    #allocation8 [shape = 'u8[4096]{0}', space=vmem, size = 0x1000, scoped, tag = 'output window, operand 0, single buffered']
    %9 = vsyncpa [#allocation3], 0
    %10 = vsyncpa [#allocation6], 0
    %11 = vsyncpa [#allocation4], 0
    // Predicated region
    $region2: #{tpu_custom_call.1} parent=1 // pred_check
      _
    $region3: #{tpu_custom_call.1} parent=1 // pred_check_branch
      %13 = sbr.rel (0) target = $region5
    $region4: #{tpu_custom_call.1} parent=1 // pred_region
      %s15 = ssub.s32 128, 128
      %16 = vsyncadd [#allocation3], %s15
      %s18 = sshll.u32 [#allocation2], 4
      %s19 = int_to_ptr.vmem [resolvable:$true] %s18
      %21 = dma.hbm_to_vmem [thread:$0]  %s0, 128, %s19, [#allocation3]
    $region5: #{tpu_custom_call.1} parent=1 // pred_fallthru
      _
    // Predicated region
    $region6: #{tpu_custom_call.1} parent=1 // pred_check
      _
    $region7: #{tpu_custom_call.1} parent=1 // pred_check_branch
      %23 = sbr.rel (0) target = $region9
    $region8: #{tpu_custom_call.1} parent=1 // pred_region
      %s25 = ssub.s32 1024, 1024
      %26 = vsyncadd [#allocation6], %s25
      %s27 = sshll.u32 [#allocation5], 4
      %s28 = int_to_ptr.vmem [resolvable:$true] %s27
      %33 = dma.hbm_to_vmem [thread:$0]  %s1, 1024, %s28, [#allocation6], 64, 64, 4
    $region9: #{tpu_custom_call.1} parent=1 // pred_fallthru
      _
    // Predicated region
    $region10: #{tpu_custom_call.1} parent=1 // pred_check
      _
    $region11: #{tpu_custom_call.1} parent=1 // pred_check_branch
      %35 = sbr.rel (0) target = $region13
    $region12: #{tpu_custom_call.1} parent=1 // pred_region
      %s37 = ssub.s32 1024, 1024
      %38 = vsyncadd [#allocation6], %s37
      %s39 = sshll.u32 [#allocation7], 4
      %s40 = int_to_ptr.vmem [resolvable:$true] %s39
      %45 = dma.hbm_to_vmem [thread:$0]  %s2, 1024, %s40, [#allocation6], 64, 64, 4
    $region13: #{tpu_custom_call.1} parent=1 // pred_fallthru
      _
    // Predicated region
    $region14: #{tpu_custom_call.1} parent=1 // pred_check
      _
    $region15: #{tpu_custom_call.1} parent=1 // pred_check_branch
      %47 = sbr.rel (0) target = $region17
    $region16: #{tpu_custom_call.1} parent=1 // pred_region
      _
    $region17: #{tpu_custom_call.1} parent=1 // pred_fallthru
      _
    // Predicated region
    $region18: #{tpu_custom_call.1} parent=1 // pred_check
      _
    $region19: #{tpu_custom_call.1} parent=1 // pred_check_branch
      %49 = sbr.rel (0) target = $region21
    $region20: #{tpu_custom_call.1} parent=1 // pred_region
      %50 = dma.done [#allocation3], 128
    $region21: #{tpu_custom_call.1} parent=1 // pred_fallthru
      _
    // Predicated region
    $region22: #{tpu_custom_call.1} parent=1 // pred_check
      _
    $region23: #{tpu_custom_call.1} parent=1 // pred_check_branch
      %52 = sbr.rel (0) target = $region25
    $region24: #{tpu_custom_call.1} parent=1 // pred_region
      %53 = dma.done [#allocation6], 1024
    $region25: #{tpu_custom_call.1} parent=1 // pred_fallthru
      _
    // Predicated region
    $region26: #{tpu_custom_call.1} parent=1 // pred_check
      _
    $region27: #{tpu_custom_call.1} parent=1 // pred_check_branch
      %55 = sbr.rel (0) target = $region29
    $region28: #{tpu_custom_call.1} parent=1 // pred_region
      %56 = dma.done [#allocation6], 1024
    $region29: #{tpu_custom_call.1} parent=1 // pred_fallthru
      _
    %v58 = vld [vmem:[#allocation2] sm:$0xff]
    %v59 = vld [vmem:[%s3] sm:$0xff]
    %60 = vadd.xlane.f32.xlu0 %v58
    %v61 = vpop.xlane.xlu0 %60
    %v62 = vmul.f32 %v61, 0.03125
    %v63 = vsub.f32 %v58, %v62
    %v64 = vmul.f32 %v63, %v63
    %65 = vadd.xlane.f32.xlu0 %v64
    %v66 = vpop.xlane.xlu0 %65
    %v67 = vmul.f32 %v62, %v62
    %v68 = vmul.f32 %v67, 96.0
    %v69 = vsub.f32 %v66, %v68
    %v70 = vmul.f32 %v69, 0.03125
    %v71 = vmax.f32 %v70, 0.0
    %v72 = vadd.f32 %v71, 1e-05
    %v73 = vrsqrt.pop %v72
    %v74 = vmul.f32 %v63, %v73
    %v75 = vlaneseq
    %v76 = vshrl.u32 %v75, 7
    %v77 = vsub.s32 2, %v76
    %v78 = vrot.slane %v59, %v77
    %v79 = vmul.f32 %v74, %v78
    %v80 = vlaneseq
    %v81 = vshrl.u32 %v80, 7
    %v82 = vsub.s32 3, %v81
    %v83 = vrot.slane %v59, %v82
    %v84 = vadd.f32 %v79, %v83
    %v85 = vmax.f32 %v84, 0.0
    %v86 = vpack.c.bf16 %v85, %v85
    %v87 = vld [vmem:[#allocation5] sm:$0xf]
    %v88 = vld [vmem:[#allocation5 + $0x4] sm:$0xf]
    %v89 = vld [vmem:[#allocation5 + $0x8] sm:$0xf]
    %v90 = vld [vmem:[#allocation5 + $0xc] sm:$0xf]
    %v91 = vld [vmem:[#allocation5 + $0x10] sm:$0xf]
    %v92 = vld [vmem:[#allocation5 + $0x14] sm:$0xf]
    %v93 = vld [vmem:[#allocation5 + $0x18] sm:$0xf]
    %v94 = vld [vmem:[#allocation5 + $0x1c] sm:$0xf]
    %v95 = vld [vmem:[#allocation5 + $0x20] sm:$0xf]
    %v96 = vld [vmem:[#allocation5 + $0x24] sm:$0xf]
    %v97 = vld [vmem:[#allocation5 + $0x28] sm:$0xf]
    %v98 = vld [vmem:[#allocation5 + $0x2c] sm:$0xf]
    %v99 = vld [vmem:[#allocation5 + $0x30] sm:$0xf]
    %v100 = vld [vmem:[#allocation5 + $0x34] sm:$0xf]
    %v101 = vld [vmem:[#allocation5 + $0x38] sm:$0xf]
    %v102 = vld [vmem:[#allocation5 + $0x3c] sm:$0xf]
    %v103 = vlaneseq
    %v104 = vshrl.u32 %v103, 7
    %v105 = vsub.s32 0, %v104
    %v106 = vrot.slane %v59, %v105
    %v123 = vunpack.c.l.b16 %v87
    %v124 = vunpack.c.l.b16 %v88
    %v125 = vunpack.c.l.b16 %v89
    %v126 = vunpack.c.l.b16 %v90
    %v127 = vunpack.c.l.b16 %v91
    %v128 = vunpack.c.l.b16 %v92
    %v129 = vunpack.c.l.b16 %v93
    %v130 = vunpack.c.l.b16 %v94
    %v131 = vunpack.c.l.b16 %v95
    %v132 = vunpack.c.l.b16 %v96
    %v133 = vunpack.c.l.b16 %v97
    %v134 = vunpack.c.l.b16 %v98
    %v135 = vunpack.c.l.b16 %v99
    %v136 = vunpack.c.l.b16 %v100
    %v137 = vunpack.c.l.b16 %v101
    %v138 = vunpack.c.l.b16 %v102
    %v139 = vpack.c.b16 %v124, %v123
    %v140 = vpack.c.b16 %v126, %v125
    %v141 = vpack.c.b16 %v128, %v127
    %v142 = vpack.c.b16 %v130, %v129
    %v143 = vpack.c.b16 %v132, %v131
    %v144 = vpack.c.b16 %v134, %v133
    %v145 = vpack.c.b16 %v136, %v135
    %v146 = vpack.c.b16 %v138, %v137
    %155 = vmatprep.subr.bf16.mxu0 0
    %156 = vmatpush1.bf16.msra.mxu0 %v139
    %157 = vmatprep.subr.bf16.mxu0 0
    %158 = vmatpush1.bf16.msra.mxu0 %v140
    %159 = vmatprep.subr.bf16.mxu0 0
    %160 = vmatpush1.bf16.msra.mxu0 %v141
    %161 = vmatprep.subr.bf16.mxu0 0
    %162 = vmatpush1.bf16.msra.mxu0 %v142
    %163 = vmatprep.subr.bf16.mxu0 0
    %164 = vmatpush1.bf16.msra.mxu0 %v143
    %165 = vmatprep.subr.bf16.mxu0 0
    %166 = vmatpush1.bf16.msra.mxu0 %v144
    %167 = vmatprep.subr.bf16.mxu0 0
    %168 = vmatpush1.bf16.msra.mxu0 %v145
    %169 = vmatprep.subr.bf16.mxu0 0
    %170 = vmatpush1.bf16.msra.mxu0 %v146
    %171 = vmatprep.subr.bf16.mxu0 0
    %172 = vmatpush1.bf16.msra.mxu0 0
    %173 = vmatprep.subr.bf16.mxu0 0
    %174 = vmatpush1.bf16.msra.mxu0 0
    %175 = vmatprep.subr.bf16.mxu0 0
    %176 = vmatpush1.bf16.msra.mxu0 0
    %177 = vmatprep.subr.bf16.mxu0 0
    %178 = vmatpush1.bf16.msra.mxu0 0
    %179 = vmatprep.subr.bf16.mxu0 0
    %180 = vmatpush1.bf16.msra.mxu0 0
    %181 = vmatprep.subr.bf16.mxu0 0
    %182 = vmatpush1.bf16.msra.mxu0 0
    %183 = vmatprep.subr.bf16.mxu0 0
    %184 = vmatpush1.bf16.msra.mxu0 0
    %185 = vmatprep.subr.bf16.mxu0 0
    %186 = vmatpush1.bf16.msra.mxu0 0
    %187 = vmatprep.mubr.bf16.mxu0 0
    %188 = vmatmul.mubr.bf16.gmra.mrb[0].mxu0 %v86
    %v189 = vpop.f32.mrb[0].mxu0
    %v190 = vadd.f32 %v106, %v189
    %v191 = vpop.f32.mrb[0].mxu0
    %v192 = vpop.f32.mrb[0].mxu0
    %v193 = vpop.f32.mrb[0].mxu0
    %194 = vdwg.mxu0
    %195 = vadd.xlane.f32.xlu0 %v190
    %v196 = vpop.xlane.xlu0 %195
    %v197 = vmul.f32 %v196, 0.03125
    %v198 = vsub.f32 %v190, %v197
    %v199 = vmul.f32 %v198, %v198
    %200 = vadd.xlane.f32.xlu0 %v199
    %v201 = vpop.xlane.xlu0 %200
    %v202 = vmul.f32 %v197, %v197
    %v203 = vmul.f32 %v202, 96.0
    %v204 = vsub.f32 %v201, %v203
    %v205 = vmul.f32 %v204, 0.03125
    %v206 = vmax.f32 %v205, 0.0
    %v207 = vadd.f32 %v206, 1e-05
    %v208 = vrsqrt.pop %v207
    %v209 = vmul.f32 %v198, %v208
    %v210 = vlaneseq
    %v211 = vshrl.u32 %v210, 7
    %v212 = vsub.s32 4, %v211
    %v213 = vrot.slane %v59, %v212
    %v214 = vmul.f32 %v209, %v213
    %v215 = vlaneseq
    %v216 = vshrl.u32 %v215, 7
    %v217 = vsub.s32 5, %v216
    %v218 = vrot.slane %v59, %v217
    %v219 = vadd.f32 %v214, %v218
    %v220 = vmax.f32 %v219, 0.0
    %v221 = vpack.c.bf16 %v220, %v220
    %v222 = vld [vmem:[#allocation7] sm:$0xf]
    %v223 = vld [vmem:[#allocation7 + $0x4] sm:$0xf]
    %v224 = vld [vmem:[#allocation7 + $0x8] sm:$0xf]
    %v225 = vld [vmem:[#allocation7 + $0xc] sm:$0xf]
    %v226 = vld [vmem:[#allocation7 + $0x10] sm:$0xf]
    %v227 = vld [vmem:[#allocation7 + $0x14] sm:$0xf]
    %v228 = vld [vmem:[#allocation7 + $0x18] sm:$0xf]
    %v229 = vld [vmem:[#allocation7 + $0x1c] sm:$0xf]
    %v230 = vld [vmem:[#allocation7 + $0x20] sm:$0xf]
    %v231 = vld [vmem:[#allocation7 + $0x24] sm:$0xf]
    %v232 = vld [vmem:[#allocation7 + $0x28] sm:$0xf]
    %v233 = vld [vmem:[#allocation7 + $0x2c] sm:$0xf]
    %v234 = vld [vmem:[#allocation7 + $0x30] sm:$0xf]
    %v235 = vld [vmem:[#allocation7 + $0x34] sm:$0xf]
    %v236 = vld [vmem:[#allocation7 + $0x38] sm:$0xf]
    %v237 = vld [vmem:[#allocation7 + $0x3c] sm:$0xf]
    %v238 = vlaneseq
    %v239 = vshrl.u32 %v238, 7
    %v240 = vsub.s32 1, %v239
    %v241 = vrot.slane %v59, %v240
    %v258 = vunpack.c.l.b16 %v222
    %v259 = vunpack.c.l.b16 %v223
    %v260 = vunpack.c.l.b16 %v224
    %v261 = vunpack.c.l.b16 %v225
    %v262 = vunpack.c.l.b16 %v226
    %v263 = vunpack.c.l.b16 %v227
    %v264 = vunpack.c.l.b16 %v228
    %v265 = vunpack.c.l.b16 %v229
    %v266 = vunpack.c.l.b16 %v230
    %v267 = vunpack.c.l.b16 %v231
    %v268 = vunpack.c.l.b16 %v232
    %v269 = vunpack.c.l.b16 %v233
    %v270 = vunpack.c.l.b16 %v234
    %v271 = vunpack.c.l.b16 %v235
    %v272 = vunpack.c.l.b16 %v236
    %v273 = vunpack.c.l.b16 %v237
    %v274 = vpack.c.b16 %v259, %v258
    %v275 = vpack.c.b16 %v261, %v260
    %v276 = vpack.c.b16 %v263, %v262
    %v277 = vpack.c.b16 %v265, %v264
    %v278 = vpack.c.b16 %v267, %v266
    %v279 = vpack.c.b16 %v269, %v268
    %v280 = vpack.c.b16 %v271, %v270
    %v281 = vpack.c.b16 %v273, %v272
    %290 = vmatprep.subr.bf16.mxu0 0
    %291 = vmatpush1.bf16.msra.mxu0 %v274
    %292 = vmatprep.subr.bf16.mxu0 0
    %293 = vmatpush1.bf16.msra.mxu0 %v275
    %294 = vmatprep.subr.bf16.mxu0 0
    %295 = vmatpush1.bf16.msra.mxu0 %v276
    %296 = vmatprep.subr.bf16.mxu0 0
    %297 = vmatpush1.bf16.msra.mxu0 %v277
    %298 = vmatprep.subr.bf16.mxu0 0
    %299 = vmatpush1.bf16.msra.mxu0 %v278
    %300 = vmatprep.subr.bf16.mxu0 0
    %301 = vmatpush1.bf16.msra.mxu0 %v279
    %302 = vmatprep.subr.bf16.mxu0 0
    %303 = vmatpush1.bf16.msra.mxu0 %v280
    %304 = vmatprep.subr.bf16.mxu0 0
    %305 = vmatpush1.bf16.msra.mxu0 %v281
    %306 = vmatprep.subr.bf16.mxu0 0
    %307 = vmatpush1.bf16.msra.mxu0 0
    %308 = vmatprep.subr.bf16.mxu0 0
    %309 = vmatpush1.bf16.msra.mxu0 0
    %310 = vmatprep.subr.bf16.mxu0 0
    %311 = vmatpush1.bf16.msra.mxu0 0
    %312 = vmatprep.subr.bf16.mxu0 0
    %313 = vmatpush1.bf16.msra.mxu0 0
    %314 = vmatprep.subr.bf16.mxu0 0
    %315 = vmatpush1.bf16.msra.mxu0 0
    %316 = vmatprep.subr.bf16.mxu0 0
    %317 = vmatpush1.bf16.msra.mxu0 0
    %318 = vmatprep.subr.bf16.mxu0 0
    %319 = vmatpush1.bf16.msra.mxu0 0
    %320 = vmatprep.subr.bf16.mxu0 0
    %321 = vmatpush1.bf16.msra.mxu0 0
    %322 = vmatprep.mubr.bf16.mxu0 0
    %323 = vmatmul.mubr.bf16.gmra.mrb[0].mxu0 %v221
    %v324 = vpop.f32.mrb[0].mxu0
    %v325 = vadd.f32 %v241, %v324
    %v326 = vpop.f32.mrb[0].mxu0
    %v327 = vpop.f32.mrb[0].mxu0
    %v328 = vpop.f32.mrb[0].mxu0
    %329 = vdwg.mxu0
    %v330 = vadd.f32 %v58, %v325
    %331 = vst [vmem:[#allocation8] sm:$0xff] %v330
    // Predicated region
    $region30: #{tpu_custom_call.1} parent=1 // pred_check
      _
    $region31: #{tpu_custom_call.1} parent=1 // pred_check_branch
      %333 = sbr.rel (0) target = $region33
    $region32: #{tpu_custom_call.1} parent=1 // pred_region
      %s335 = ssub.s32 128, 128
      %336 = vsyncadd [#allocation4], %s335
      %s338 = sshll.u32 [#allocation8], 4
      %s339 = int_to_ptr.vmem [resolvable:$true] %s338
      %341 = dma.vmem_to_hbm [thread:$0]  %s339, 128, %s4, [#allocation4]
    $region33: #{tpu_custom_call.1} parent=1 // pred_fallthru
      _
    // Predicated region
    $region34: #{tpu_custom_call.1} parent=1 // pred_check
      _
    $region35: #{tpu_custom_call.1} parent=1 // pred_check_branch
      %343 = sbr.rel (0) target = $region37
    $region36: #{tpu_custom_call.1} parent=1 // pred_region
      %344 = dma.done [#allocation4], 128
    $region37: #{tpu_custom_call.1} parent=1 // pred_fallthru
      _
    %345 = vsyncpa [#allocation3], 1
    %346 = vsyncpa [#allocation6], 1
    %347 = vsyncpa [#allocation4], 1

// kernel: tpu_custom_call.1
$region0: #{tpu_custom_call.1}
  #allocation0 [shape = 'u32[]', space=smem, size = 0x4, offset = 0x4, fixed_abs, tag = 'smem constant byte address 0x4 - core index']
  #allocation1 [shape = 'u32[144,128]{1,0:T(1,128)}', space=vmem, size = 0x12000, scoped, tag = 'internal scratch']
  %s0 = inlined_call_operand.hbm [shape: f32[8,128], index: 0, kind: input, shape index: {}]
  %s1 = inlined_call_operand.hbm [shape: bf16[128,128], index: 1, kind: input, shape index: {}]
  %s2 = inlined_call_operand.hbm [shape: bf16[128,128], index: 2, kind: input, shape index: {}]
  %s3 = inlined_call_operand.vmem [shape: f32[8,128], index: 3, kind: input, shape index: {}]
  %s4 = inlined_call_operand.hbm [shape: f32[8,128], index: 4, kind: output, shape index: {}]
  %s5 = sld [smem:[#allocation0]]
  $region38: #{tpu_custom_call.1} parent=0
    _
  %s7 = ssub.s32 1, %s5
  %s8 = scalar_select 0, %s7, %s5
  $region1: #{tpu_custom_call.1} parent=0
    #allocation2 [shape = 'u8[4096]{0}', space=vmem, size = 0x1000, scoped, tag = 'input window, operand 0, single buffered']
    #allocation3 [shape = 's32[1]{0}', space=sflag, size = 0x4, scoped, tag = 'scoped memory for tpu_custom_call.1']
    #allocation4 [shape = 's32[1]{0}', space=sflag, size = 0x4, scoped, tag = 'scoped memory for tpu_custom_call.1']
    #allocation5 [shape = 'u8[32768]{0}', space=vmem, size = 0x8000, scoped, tag = 'input window, operand 1, single buffered']
    #allocation6 [shape = 's32[1]{0}', space=sflag, size = 0x4, scoped, tag = 'scoped memory for tpu_custom_call.1']
    #allocation7 [shape = 'u8[32768]{0}', space=vmem, size = 0x8000, scoped, tag = 'input window, operand 2, single buffered']
    #allocation8 [shape = 'u8[4096]{0}', space=vmem, size = 0x1000, scoped, tag = 'output window, operand 0, single buffered']
    %9 = vsyncpa [#allocation3], 0
    %10 = vsyncpa [#allocation6], 0
    %11 = vsyncpa [#allocation4], 0
    // Predicated region
    $region2: #{tpu_custom_call.1} parent=1 // pred_check
      _
    $region3: #{tpu_custom_call.1} parent=1 // pred_check_branch
      %13 = sbr.rel (0) target = $region5
    $region4: #{tpu_custom_call.1} parent=1 // pred_region
      %s15 = ssub.s32 128, 128
      %16 = vsyncadd [#allocation3], %s15
      %s18 = sshll.u32 [#allocation2], 4
      %s19 = int_to_ptr.vmem [resolvable:$true] %s18
      %21 = dma.hbm_to_vmem [thread:$0]  %s0, 128, %s19, [#allocation3]
    $region5: #{tpu_custom_call.1} parent=1 // pred_fallthru
      _
    // Predicated region
    $region6: #{tpu_custom_call.1} parent=1 // pred_check
      _
    $region7: #{tpu_custom_call.1} parent=1 // pred_check_branch
      %23 = sbr.rel (0) target = $region9
    $region8: #{tpu_custom_call.1} parent=1 // pred_region
      %s25 = ssub.s32 1024, 1024
      %26 = vsyncadd [#allocation6], %s25
      %s27 = sshll.u32 [#allocation5], 4
      %s28 = int_to_ptr.vmem [resolvable:$true] %s27
      %33 = dma.hbm_to_vmem [thread:$0]  %s1, 1024, %s28, [#allocation6], 64, 64, 4
    $region9: #{tpu_custom_call.1} parent=1 // pred_fallthru
      _
    // Predicated region
    $region10: #{tpu_custom_call.1} parent=1 // pred_check
      _
    $region11: #{tpu_custom_call.1} parent=1 // pred_check_branch
      %35 = sbr.rel (0) target = $region13
    $region12: #{tpu_custom_call.1} parent=1 // pred_region
      %s37 = ssub.s32 1024, 1024
      %38 = vsyncadd [#allocation6], %s37
      %s39 = sshll.u32 [#allocation7], 4
      %s40 = int_to_ptr.vmem [resolvable:$true] %s39
      %45 = dma.hbm_to_vmem [thread:$0]  %s2, 1024, %s40, [#allocation6], 64, 64, 4
    $region13: #{tpu_custom_call.1} parent=1 // pred_fallthru
      _
    // Predicated region
    $region14: #{tpu_custom_call.1} parent=1 // pred_check
      _
    $region15: #{tpu_custom_call.1} parent=1 // pred_check_branch
      %47 = sbr.rel (0) target = $region17
    $region16: #{tpu_custom_call.1} parent=1 // pred_region
      _
    $region17: #{tpu_custom_call.1} parent=1 // pred_fallthru
      _
    // Predicated region
    $region18: #{tpu_custom_call.1} parent=1 // pred_check
      _
    $region19: #{tpu_custom_call.1} parent=1 // pred_check_branch
      %49 = sbr.rel (0) target = $region21
    $region20: #{tpu_custom_call.1} parent=1 // pred_region
      %50 = dma.done [#allocation3], 128
    $region21: #{tpu_custom_call.1} parent=1 // pred_fallthru
      _
    // Predicated region
    $region22: #{tpu_custom_call.1} parent=1 // pred_check
      _
    $region23: #{tpu_custom_call.1} parent=1 // pred_check_branch
      %52 = sbr.rel (0) target = $region25
    $region24: #{tpu_custom_call.1} parent=1 // pred_region
      %53 = dma.done [#allocation6], 1024
    $region25: #{tpu_custom_call.1} parent=1 // pred_fallthru
      _
    // Predicated region
    $region26: #{tpu_custom_call.1} parent=1 // pred_check
      _
    $region27: #{tpu_custom_call.1} parent=1 // pred_check_branch
      %55 = sbr.rel (0) target = $region29
    $region28: #{tpu_custom_call.1} parent=1 // pred_region
      %56 = dma.done [#allocation6], 1024
    $region29: #{tpu_custom_call.1} parent=1 // pred_fallthru
      _
    %v58 = vld [vmem:[#allocation2] sm:$0xff]
    %v59 = vld [vmem:[%s3] sm:$0xff]
    %60 = vadd.xlane.f32.xlu0 %v58
    %v61 = vpop.xlane.xlu0 %60
    %v62 = vmul.f32 %v61, 0.03125
    %v63 = vsub.f32 %v58, %v62
    %v64 = vmul.f32 %v63, %v63
    %65 = vadd.xlane.f32.xlu0 %v64
    %v66 = vpop.xlane.xlu0 %65
    %v67 = vmul.f32 %v62, %v62
    %v68 = vmul.f32 %v67, 96.0
    %v69 = vsub.f32 %v66, %v68
    %v70 = vmul.f32 %v69, 0.03125
    %v71 = vmax.f32 %v70, 0.0
    %v72 = vadd.f32 %v71, 1e-05
    %v73 = vrsqrt.pop %v72
    %v74 = vmul.f32 %v63, %v73
    %v75 = vlaneseq
    %v76 = vshrl.u32 %v75, 7
    %v77 = vsub.s32 2, %v76
    %v78 = vrot.slane %v59, %v77
    %v79 = vmul.f32 %v74, %v78
    %v80 = vlaneseq
    %v81 = vshrl.u32 %v80, 7
    %v82 = vsub.s32 3, %v81
    %v83 = vrot.slane %v59, %v82
    %v84 = vadd.f32 %v79, %v83
    %v85 = vmax.f32 %v84, 0.0
    %v86 = vpack.c.bf16 %v85, %v85
    %v87 = vld [vmem:[#allocation5] sm:$0xf]
    %v88 = vld [vmem:[#allocation5 + $0x4] sm:$0xf]
    %v89 = vld [vmem:[#allocation5 + $0x8] sm:$0xf]
    %v90 = vld [vmem:[#allocation5 + $0xc] sm:$0xf]
    %v91 = vld [vmem:[#allocation5 + $0x10] sm:$0xf]
    %v92 = vld [vmem:[#allocation5 + $0x14] sm:$0xf]
    %v93 = vld [vmem:[#allocation5 + $0x18] sm:$0xf]
    %v94 = vld [vmem:[#allocation5 + $0x1c] sm:$0xf]
    %v95 = vld [vmem:[#allocation5 + $0x20] sm:$0xf]
    %v96 = vld [vmem:[#allocation5 + $0x24] sm:$0xf]
    %v97 = vld [vmem:[#allocation5 + $0x28] sm:$0xf]
    %v98 = vld [vmem:[#allocation5 + $0x2c] sm:$0xf]
    %v99 = vld [vmem:[#allocation5 + $0x30] sm:$0xf]
    %v100 = vld [vmem:[#allocation5 + $0x34] sm:$0xf]
    %v101 = vld [vmem:[#allocation5 + $0x38] sm:$0xf]
    %v102 = vld [vmem:[#allocation5 + $0x3c] sm:$0xf]
    %v103 = vlaneseq
    %v104 = vshrl.u32 %v103, 7
    %v105 = vsub.s32 0, %v104
    %v106 = vrot.slane %v59, %v105
    %v123 = vunpack.c.l.b16 %v87
    %v124 = vunpack.c.l.b16 %v88
    %v125 = vunpack.c.l.b16 %v89
    %v126 = vunpack.c.l.b16 %v90
    %v127 = vunpack.c.l.b16 %v91
    %v128 = vunpack.c.l.b16 %v92
    %v129 = vunpack.c.l.b16 %v93
    %v130 = vunpack.c.l.b16 %v94
    %v131 = vunpack.c.l.b16 %v95
    %v132 = vunpack.c.l.b16 %v96
    %v133 = vunpack.c.l.b16 %v97
    %v134 = vunpack.c.l.b16 %v98
    %v135 = vunpack.c.l.b16 %v99
    %v136 = vunpack.c.l.b16 %v100
    %v137 = vunpack.c.l.b16 %v101
    %v138 = vunpack.c.l.b16 %v102
    %v139 = vpack.c.b16 %v124, %v123
    %v140 = vpack.c.b16 %v126, %v125
    %v141 = vpack.c.b16 %v128, %v127
    %v142 = vpack.c.b16 %v130, %v129
    %v143 = vpack.c.b16 %v132, %v131
    %v144 = vpack.c.b16 %v134, %v133
    %v145 = vpack.c.b16 %v136, %v135
    %v146 = vpack.c.b16 %v138, %v137
    %155 = vmatprep.subr.bf16.mxu0 0
    %156 = vmatpush1.bf16.msra.mxu0 %v139
    %157 = vmatprep.subr.bf16.mxu0 0
    %158 = vmatpush1.bf16.msra.mxu0 %v140
    %159 = vmatprep.subr.bf16.mxu0 0
    %160 = vmatpush1.bf16.msra.mxu0 %v141
    %161 = vmatprep.subr.bf16.mxu0 0
    %162 = vmatpush1.bf16.msra.mxu0 %v142
    %163 = vmatprep.subr.bf16.mxu0 0
    %164 = vmatpush1.bf16.msra.mxu0 %v143
    %165 = vmatprep.subr.bf16.mxu0 0
    %166 = vmatpush1.bf16.msra.mxu0 %v144
    %167 = vmatprep.subr.bf16.mxu0 0
    %168 = vmatpush1.bf16.msra.mxu0 %v145
    %169 = vmatprep.subr.bf16.mxu0 0
    %170 = vmatpush1.bf16.msra.mxu0 %v146
    %171 = vmatprep.subr.bf16.mxu0 0
    %172 = vmatpush1.bf16.msra.mxu0 0
    %173 = vmatprep.subr.bf16.mxu0 0
    %174 = vmatpush1.bf16.msra.mxu0 0
    %175 = vmatprep.subr.bf16.mxu0 0
    %176 = vmatpush1.bf16.msra.mxu0 0
    %177 = vmatprep.subr.bf16.mxu0 0
    %178 = vmatpush1.bf16.msra.mxu0 0
    %179 = vmatprep.subr.bf16.mxu0 0
    %180 = vmatpush1.bf16.msra.mxu0 0
    %181 = vmatprep.subr.bf16.mxu0 0
    %182 = vmatpush1.bf16.msra.mxu0 0
    %183 = vmatprep.subr.bf16.mxu0 0
    %184 = vmatpush1.bf16.msra.mxu0 0
    %185 = vmatprep.subr.bf16.mxu0 0
    %186 = vmatpush1.bf16.msra.mxu0 0
    %187 = vmatprep.mubr.bf16.mxu0 0
    %188 = vmatmul.mubr.bf16.gmra.mrb[0].mxu0 %v86
    %v189 = vpop.f32.mrb[0].mxu0
    %v190 = vadd.f32 %v106, %v189
    %v191 = vpop.f32.mrb[0].mxu0
    %v192 = vpop.f32.mrb[0].mxu0
    %v193 = vpop.f32.mrb[0].mxu0
    %194 = vdwg.mxu0
    %195 = vadd.xlane.f32.xlu0 %v190
    %v196 = vpop.xlane.xlu0 %195
    %v197 = vmul.f32 %v196, 0.03125
    %v198 = vsub.f32 %v190, %v197
    %v199 = vmul.f32 %v198, %v198
    %200 = vadd.xlane.f32.xlu0 %v199
    %v201 = vpop.xlane.xlu0 %200
    %v202 = vmul.f32 %v197, %v197
    %v203 = vmul.f32 %v202, 96.0
    %v204 = vsub.f32 %v201, %v203
    %v205 = vmul.f32 %v204, 0.03125
    %v206 = vmax.f32 %v205, 0.0
    %v207 = vadd.f32 %v206, 1e-05
    %v208 = vrsqrt.pop %v207
    %v209 = vmul.f32 %v198, %v208
    %v210 = vlaneseq
    %v211 = vshrl.u32 %v210, 7
    %v212 = vsub.s32 4, %v211
    %v213 = vrot.slane %v59, %v212
    %v214 = vmul.f32 %v209, %v213
    %v215 = vlaneseq
    %v216 = vshrl.u32 %v215, 7
    %v217 = vsub.s32 5, %v216
    %v218 = vrot.slane %v59, %v217
    %v219 = vadd.f32 %v214, %v218
    %v220 = vmax.f32 %v219, 0.0
    %v221 = vpack.c.bf16 %v220, %v220
    %v222 = vld [vmem:[#allocation7] sm:$0xf]
    %v223 = vld [vmem:[#allocation7 + $0x4] sm:$0xf]
    %v224 = vld [vmem:[#allocation7 + $0x8] sm:$0xf]
    %v225 = vld [vmem:[#allocation7 + $0xc] sm:$0xf]
    %v226 = vld [vmem:[#allocation7 + $0x10] sm:$0xf]
    %v227 = vld [vmem:[#allocation7 + $0x14] sm:$0xf]
    %v228 = vld [vmem:[#allocation7 + $0x18] sm:$0xf]
    %v229 = vld [vmem:[#allocation7 + $0x1c] sm:$0xf]
    %v230 = vld [vmem:[#allocation7 + $0x20] sm:$0xf]
    %v231 = vld [vmem:[#allocation7 + $0x24] sm:$0xf]
    %v232 = vld [vmem:[#allocation7 + $0x28] sm:$0xf]
    %v233 = vld [vmem:[#allocation7 + $0x2c] sm:$0xf]
    %v234 = vld [vmem:[#allocation7 + $0x30] sm:$0xf]
    %v235 = vld [vmem:[#allocation7 + $0x34] sm:$0xf]
    %v236 = vld [vmem:[#allocation7 + $0x38] sm:$0xf]
    %v237 = vld [vmem:[#allocation7 + $0x3c] sm:$0xf]
    %v238 = vlaneseq
    %v239 = vshrl.u32 %v238, 7
    %v240 = vsub.s32 1, %v239
    %v241 = vrot.slane %v59, %v240
    %v258 = vunpack.c.l.b16 %v222
    %v259 = vunpack.c.l.b16 %v223
    %v260 = vunpack.c.l.b16 %v224
    %v261 = vunpack.c.l.b16 %v225
    %v262 = vunpack.c.l.b16 %v226
    %v263 = vunpack.c.l.b16 %v227
    %v264 = vunpack.c.l.b16 %v228
    %v265 = vunpack.c.l.b16 %v229
    %v266 = vunpack.c.l.b16 %v230
    %v267 = vunpack.c.l.b16 %v231
    %v268 = vunpack.c.l.b16 %v232
    %v269 = vunpack.c.l.b16 %v233
    %v270 = vunpack.c.l.b16 %v234
    %v271 = vunpack.c.l.b16 %v235
    %v272 = vunpack.c.l.b16 %v236
    %v273 = vunpack.c.l.b16 %v237
    %v274 = vpack.c.b16 %v259, %v258
    %v275 = vpack.c.b16 %v261, %v260
    %v276 = vpack.c.b16 %v263, %v262
    %v277 = vpack.c.b16 %v265, %v264
    %v278 = vpack.c.b16 %v267, %v266
    %v279 = vpack.c.b16 %v269, %v268
    %v280 = vpack.c.b16 %v271, %v270
    %v281 = vpack.c.b16 %v273, %v272
    %290 = vmatprep.subr.bf16.mxu0 0
    %291 = vmatpush1.bf16.msra.mxu0 %v274
    %292 = vmatprep.subr.bf16.mxu0 0
    %293 = vmatpush1.bf16.msra.mxu0 %v275
    %294 = vmatprep.subr.bf16.mxu0 0
    %295 = vmatpush1.bf16.msra.mxu0 %v276
    %296 = vmatprep.subr.bf16.mxu0 0
    %297 = vmatpush1.bf16.msra.mxu0 %v277
    %298 = vmatprep.subr.bf16.mxu0 0
    %299 = vmatpush1.bf16.msra.mxu0 %v278
    %300 = vmatprep.subr.bf16.mxu0 0
    %301 = vmatpush1.bf16.msra.mxu0 %v279
    %302 = vmatprep.subr.bf16.mxu0 0
    %303 = vmatpush1.bf16.msra.mxu0 %v280
    %304 = vmatprep.subr.bf16.mxu0 0
    %305 = vmatpush1.bf16.msra.mxu0 %v281
    %306 = vmatprep.subr.bf16.mxu0 0
    %307 = vmatpush1.bf16.msra.mxu0 0
    %308 = vmatprep.subr.bf16.mxu0 0
    %309 = vmatpush1.bf16.msra.mxu0 0
    %310 = vmatprep.subr.bf16.mxu0 0
    %311 = vmatpush1.bf16.msra.mxu0 0
    %312 = vmatprep.subr.bf16.mxu0 0
    %313 = vmatpush1.bf16.msra.mxu0 0
    %314 = vmatprep.subr.bf16.mxu0 0
    %315 = vmatpush1.bf16.msra.mxu0 0
    %316 = vmatprep.subr.bf16.mxu0 0
    %317 = vmatpush1.bf16.msra.mxu0 0
    %318 = vmatprep.subr.bf16.mxu0 0
    %319 = vmatpush1.bf16.msra.mxu0 0
    %320 = vmatprep.subr.bf16.mxu0 0
    %321 = vmatpush1.bf16.msra.mxu0 0
    %322 = vmatprep.mubr.bf16.mxu0 0
    %323 = vmatmul.mubr.bf16.gmra.mrb[0].mxu0 %v221
    %v324 = vpop.f32.mrb[0].mxu0
    %v325 = vadd.f32 %v241, %v324
    %v326 = vpop.f32.mrb[0].mxu0
    %v327 = vpop.f32.mrb[0].mxu0
    %v328 = vpop.f32.mrb[0].mxu0
    %329 = vdwg.mxu0
    %v330 = vadd.f32 %v58, %v325
    %331 = vst [vmem:[#allocation8] sm:$0xff] %v330
    // Predicated region
    $region30: #{tpu_custom_call.1} parent=1 // pred_check
      _
    $region31: #{tpu_custom_call.1} parent=1 // pred_check_branch
      %333 = sbr.rel (0) target = $region33
    $region32: #{tpu_custom_call.1} parent=1 // pred_region
      %s335 = ssub.s32 128, 128
      %336 = vsyncadd [#allocation4], %s335
      %s338 = sshll.u32 [#allocation8], 4
      %s339 = int_to_ptr.vmem [resolvable:$true] %s338
      %341 = dma.vmem_to_hbm [thread:$0]  %s339, 128, %s4, [#allocation4]
    $region33: #{tpu_custom_call.1} parent=1 // pred_fallthru
      _
    // Predicated region
    $region34: #{tpu_custom_call.1} parent=1 // pred_check
      _
    $region35: #{tpu_custom_call.1} parent=1 // pred_check_branch
      %343 = sbr.rel (0) target = $region37
    $region36: #{tpu_custom_call.1} parent=1 // pred_region
      %344 = dma.done [#allocation4], 128
    $region37: #{tpu_custom_call.1} parent=1 // pred_fallthru
      _
    %345 = vsyncpa [#allocation3], 1
    %346 = vsyncpa [#allocation6], 1
    %347 = vsyncpa [#allocation4], 1

</llo_original>
